<compile_context>
chip_gen: v7x
topology: tpu7x:2x2x1
jax: 0.10.0
libtpu: 0.0.40
codegen_flags: <defaults>
</compile_context>

<pallas_src>
import jax
import jax.numpy as jnp
from jax.experimental import pallas as pl
from jax.experimental.pallas import tpu as pltpu

_OUT_PAD = 8  # fc4 padded from 3 -> 8 output columns (zero cols; sliced off after)


def _mlp_kernel(xa_ref, xb_ref,
                w1a_ref, w1b_ref, b1_ref,
                w2_ref, b2_ref,
                w3_ref, b3_ref,
                w4_ref, b4_ref,
                o_ref):
    # Matmul operand dtype follows the weights (bf16 by default, f32 optional).
    cdt = w1a_ref.dtype

    xa = xa_ref[...].astype(cdt)
    xb = xb_ref[...].astype(cdt)

    # fc1 (+ folded bn1): cat(xa, xb) @ W1 == xa @ W1a + xb @ W1b  (no concat)
    h = (jnp.dot(xa, w1a_ref[...], preferred_element_type=jnp.float32)
         + jnp.dot(xb, w1b_ref[...], preferred_element_type=jnp.float32)
         + b1_ref[...])
    h = jnp.maximum(h, 0.0)          # dropout1 is identity in eval mode

    # fc2 (+ folded bn2) -> relu
    h = jnp.dot(h.astype(cdt), w2_ref[...],
                preferred_element_type=jnp.float32) + b2_ref[...]
    h = jnp.maximum(h, 0.0)          # dropout2 is identity in eval mode

    # fc3 (+ folded bn3) -> relu
    h = jnp.dot(h.astype(cdt), w3_ref[...],
                preferred_element_type=jnp.float32) + b3_ref[...]
    h = jnp.maximum(h, 0.0)

    # fc4 (zero-padded to 8 output lanes; no activation)
    out = jnp.dot(h.astype(cdt), w4_ref[...],
                  preferred_element_type=jnp.float32) + b4_ref[...]
    o_ref[...] = out.astype(o_ref.dtype)


def pos_reg_model_forward(start_kp, next_kp, params, eps=1e-5,
                          matmul_dtype=jnp.bfloat16):
    """Whole MLP in one Pallas kernel, batch-tiled, weights VMEM-resident."""
    B, input_size = start_kp.shape

    # --- Fold BatchNorm (eval mode) into the preceding linear layer (free, in JAX).
    def fold(w, b, bn):
        gamma, beta, mean, var = bn
        s = gamma / jnp.sqrt(var + eps)
        t = beta - mean * s
        return w * s[None, :], b * s + t

    w1, b1 = fold(params["w1"], params["b1"], params["bn1"])
    w2, b2 = fold(params["w2"], params["b2"], params["bn2"])
    w3, b3 = fold(params["w3"], params["b3"], params["bn3"])

    # --- Narrow padded final layer: 3 -> 8 output columns (exact: zero cols).
    w4, b4 = params["w4"], params["b4"]
    out_real = w4.shape[1]
    w4p = jnp.zeros((w4.shape[0], _OUT_PAD), jnp.float32).at[:, :out_real].set(w4)
    b4p = jnp.zeros((_OUT_PAD,), jnp.float32).at[:out_real].set(b4)

    # --- Split fc1 weight so start/next keypoints feed the MXU without a concat.
    w1a, w1b = w1[:input_size], w1[input_size:]

    # --- MXU operands in matmul_dtype (bf16 default); biases stay f32 (added
    #     post-accumulation in f32 inside the kernel).
    w1a = w1a.astype(matmul_dtype)
    w1b = w1b.astype(matmul_dtype)
    w2 = w2.astype(matmul_dtype)
    w3 = w3.astype(matmul_dtype)
    w4p = w4p.astype(matmul_dtype)
    b1r = b1.reshape(1, -1).astype(jnp.float32)
    b2r = b2.reshape(1, -1).astype(jnp.float32)
    b3r = b3.reshape(1, -1).astype(jnp.float32)
    b4r = b4p.reshape(1, -1).astype(jnp.float32)

    # --- Batch tiling: multiple of 8 sublanes; >= 2 tiles whenever possible so
    #     the v7x second TensorCore gets work; capped at 512 rows per tile.
    #     Ragged last tile is handled by Pallas (no jnp.pad HBM copies).
    def rup(x, m):
        return ((x + m - 1) // m) * m

    B8 = rup(B, 8)
    if B8 <= 8:
        TB = 8
    else:
        TB = min(512, rup(pl.cdiv(B8, 2), 8))
    grid = (pl.cdiv(B, TB),)

    def resident(a):
        # Weight/bias block == full array, same block every grid step (loads once).
        return pl.BlockSpec(a.shape, lambda i: (0,) * a.ndim)

    out = pl.pallas_call(
        _mlp_kernel,
        out_shape=jax.ShapeDtypeStruct((B, _OUT_PAD), jnp.float32),
        grid=grid,
        in_specs=[
            pl.BlockSpec((TB, input_size), lambda i: (i, 0)),   # start_kp tile
            pl.BlockSpec((TB, input_size), lambda i: (i, 0)),   # next_kp tile
            resident(w1a), resident(w1b), resident(b1r),
            resident(w2), resident(b2r),
            resident(w3), resident(b3r),
            resident(w4p), resident(b4r),
        ],
        out_specs=pl.BlockSpec((TB, _OUT_PAD), lambda i: (i, 0)),
        compiler_params=pltpu.CompilerParams(
            dimension_semantics=("parallel",),      # shard batch tiles across TCs
            vmem_limit_bytes=32 << 20,
        ),
    )(start_kp, next_kp,
      w1a, w1b, b1r,
      w2, b2r,
      w3, b3r,
      w4p, b4r)

    return out[:, :out_real]


def init_params(key, input_size):
    """Deterministic synthetic parameters matching the PyTorch module shapes."""
    dims = [(input_size * 2, 512), (512, 256), (256, 128), (128, 3)]
    params = {}
    keys = jax.random.split(key, 16)
    ki = 0
    for li, (din, dout) in enumerate(dims, start=1):
        bound = 1.0 / jnp.sqrt(jnp.float32(din))
        params[f"w{li}"] = jax.random.uniform(
            keys[ki], (din, dout), jnp.float32, -bound, bound); ki += 1
        params[f"b{li}"] = jax.random.uniform(
            keys[ki], (dout,), jnp.float32, -bound, bound); ki += 1
    # BatchNorm1d params (eval mode: gamma, beta, running_mean, running_var)
    for li, d in zip((1, 2, 3), (512, 256, 128)):
        gamma = 1.0 + 0.1 * jax.random.normal(keys[ki], (d,), jnp.float32); ki += 1
        beta = 0.1 * jax.random.normal(keys[ki], (d,), jnp.float32); ki += 1
        mean = 0.05 * jax.random.normal(jax.random.fold_in(key, 100 + li), (d,), jnp.float32)
        var = 0.9 + 0.2 * jax.random.uniform(jax.random.fold_in(key, 200 + li), (d,), jnp.float32)
        params[f"bn{li}"] = (gamma, beta, mean, var)
    return params


def reference_forward(start_kp, next_kp, params, eps=1e-5):
    """Pure-JAX reference (highest matmul precision) for correctness checking."""
    x = jnp.concatenate([start_kp, next_kp], axis=1)
    for li, act in ((1, True), (2, True), (3, True), (4, False)):
        x = jnp.dot(x, params[f"w{li}"],
                    precision=jax.lax.Precision.HIGHEST) + params[f"b{li}"]
        if act:
            g, b, m, v = params[f"bn{li}"]
            x = (x - m) / jnp.sqrt(v + eps) * g + b
            x = jnp.maximum(x, 0.0)
    return x


if __name__ == "__main__":
    key = jax.random.PRNGKey(0)
    input_size = 8          # number of keypoint coordinates per input
    batch = 4

    kx, ky, kp = jax.random.split(key, 3)
    start_kp = jax.random.normal(kx, (batch, input_size), jnp.float32)
    next_kp = jax.random.normal(ky, (batch, input_size), jnp.float32)
    params = init_params(kp, input_size)

    ref = reference_forward(start_kp, next_kp, params)

    # f32-operand path: near-exact vs HIGHEST-precision reference.
    out_f32 = jax.block_until_ready(
        pos_reg_model_forward(start_kp, next_kp, params, matmul_dtype=jnp.float32))
    assert out_f32.shape == (batch, 3)
    assert jnp.allclose(out_f32, ref, atol=1e-3, rtol=1e-3), (out_f32, ref)

    # bf16-operand path (default / performance config): f32 accumulation,
    # tolerance appropriate for bf16 operand quantization.
    out_bf16 = jax.block_until_ready(
        pos_reg_model_forward(start_kp, next_kp, params))
    assert out_bf16.shape == (batch, 3)
    assert jnp.allclose(out_bf16, ref, atol=5e-2, rtol=5e-2), (out_bf16, ref)

    # Multi-tile + ragged-last-block path (2 batch tiles -> exercises megacore
    # sharding on v7x and the non-divisible grid handling).
    batch2 = 300
    kx2, ky2 = jax.random.split(jax.random.fold_in(key, 7), 2)
    s2 = jax.random.normal(kx2, (batch2, input_size), jnp.float32)
    n2 = jax.random.normal(ky2, (batch2, input_size), jnp.float32)
    out2 = jax.block_until_ready(pos_reg_model_forward(s2, n2, params))
    ref2 = reference_forward(s2, n2, params)
    assert out2.shape == (batch2, 3)
    assert jnp.allclose(out2, ref2, atol=5e-2, rtol=5e-2)

    print("KERNEL_OK")
</pallas_src>

<mosaic_0001>
module attributes {stable_mosaic.version = 11 : i64} {
  func.func @_mlp_kernel(%arg0: i32, %arg1: memref<8x8xf32, #tpu.memory_space<vmem>>, %arg2: memref<8x8xf32, #tpu.memory_space<vmem>>, %arg3: memref<8x512xf32, #tpu.memory_space<vmem>>, %arg4: memref<8x512xf32, #tpu.memory_space<vmem>>, %arg5: memref<1x512xf32, #tpu.memory_space<vmem>>, %arg6: memref<512x256xf32, #tpu.memory_space<vmem>>, %arg7: memref<1x256xf32, #tpu.memory_space<vmem>>, %arg8: memref<256x128xf32, #tpu.memory_space<vmem>>, %arg9: memref<1x128xf32, #tpu.memory_space<vmem>>, %arg10: memref<128x8xf32, #tpu.memory_space<vmem>>, %arg11: memref<1x8xf32, #tpu.memory_space<vmem>>, %arg12: memref<8x8xf32, #tpu.memory_space<vmem>>) attributes {dimension_semantics = [#tpu.dimension_semantics<parallel>], iteration_bounds = array<i64: 1>, scalar_prefetch = 0 : i64, scratch_operands = 0 : i64, tpu.core_type = #tpu.core_type<tc>, window_params = [{transform_indices = @transform_0, window_bounds = array<i64: 8, 8>}, {transform_indices = @transform_1, window_bounds = array<i64: 8, 8>}, {pipeline_mode = #tpu.pipeline_mode<synchronous>, transform_indices = @transform_2, window_bounds = array<i64: 8, 512>}, {pipeline_mode = #tpu.pipeline_mode<synchronous>, transform_indices = @transform_3, window_bounds = array<i64: 8, 512>}, {pipeline_mode = #tpu.pipeline_mode<synchronous>, transform_indices = @transform_4, window_bounds = array<i64: 1, 512>}, {pipeline_mode = #tpu.pipeline_mode<synchronous>, transform_indices = @transform_5, window_bounds = array<i64: 512, 256>}, {pipeline_mode = #tpu.pipeline_mode<synchronous>, transform_indices = @transform_6, window_bounds = array<i64: 1, 256>}, {pipeline_mode = #tpu.pipeline_mode<synchronous>, transform_indices = @transform_7, window_bounds = array<i64: 256, 128>}, {pipeline_mode = #tpu.pipeline_mode<synchronous>, transform_indices = @transform_8, window_bounds = array<i64: 1, 128>}, {pipeline_mode = #tpu.pipeline_mode<synchronous>, transform_indices = @transform_9, window_bounds = array<i64: 128, 8>}, {pipeline_mode = #tpu.pipeline_mode<synchronous>, transform_indices = @transform_10, window_bounds = array<i64: 1, 8>}, {transform_indices = @transform_11, window_bounds = array<i64: 8, 8>}]} {
    %c0 = arith.constant 0 : index
    %c0_0 = arith.constant 0 : index
    %0 = vector.load %arg1[%c0, %c0_0] : memref<8x8xf32, #tpu.memory_space<vmem>>, vector<8x8xf32>
    %c0_1 = arith.constant 0 : index
    %c0_2 = arith.constant 0 : index
    %1 = vector.load %arg2[%c0_1, %c0_2] : memref<8x8xf32, #tpu.memory_space<vmem>>, vector<8x8xf32>
    %c0_3 = arith.constant 0 : index
    %c0_4 = arith.constant 0 : index
    %2 = vector.load %arg3[%c0_3, %c0_4] : memref<8x512xf32, #tpu.memory_space<vmem>>, vector<8x512xf32>
    %cst = arith.constant dense<0.000000e+00> : vector<8x512xf32>
    %3 = tpu.matmul %0, %2, %cst {dimension_numbers = #tpu.dot_dimension_numbers<[1], [0], [0], [1], [0, 0, 1, 1], [], []>} : vector<8x8xf32>, vector<8x512xf32>, vector<8x512xf32> -> vector<8x512xf32>
    %c0_5 = arith.constant 0 : index
    %c0_6 = arith.constant 0 : index
    %4 = vector.load %arg4[%c0_5, %c0_6] : memref<8x512xf32, #tpu.memory_space<vmem>>, vector<8x512xf32>
    %cst_7 = arith.constant dense<0.000000e+00> : vector<8x512xf32>
    %5 = tpu.matmul %1, %4, %cst_7 {dimension_numbers = #tpu.dot_dimension_numbers<[1], [0], [0], [1], [0, 0, 1, 1], [], []>} : vector<8x8xf32>, vector<8x512xf32>, vector<8x512xf32> -> vector<8x512xf32>
    %6 = arith.addf %3, %5 : vector<8x512xf32>
    %c0_8 = arith.constant 0 : index
    %c0_9 = arith.constant 0 : index
    %7 = vector.load %arg5[%c0_8, %c0_9] : memref<1x512xf32, #tpu.memory_space<vmem>>, vector<1x512xf32>
    %8 = vector.broadcast %7 : vector<1x512xf32> to vector<8x512xf32>
    %9 = arith.addf %6, %8 : vector<8x512xf32>
    %cst_10 = arith.constant 0.000000e+00 : f32
    %10 = vector.broadcast %cst_10 : f32 to vector<8x512xf32>
    %11 = arith.maximumf %9, %10 : vector<8x512xf32>
    %c0_11 = arith.constant 0 : index
    %c0_12 = arith.constant 0 : index
    %12 = vector.load %arg6[%c0_11, %c0_12] : memref<512x256xf32, #tpu.memory_space<vmem>>, vector<512x256xf32>
    %cst_13 = arith.constant dense<0.000000e+00> : vector<8x256xf32>
    %13 = tpu.matmul %11, %12, %cst_13 {dimension_numbers = #tpu.dot_dimension_numbers<[1], [0], [0], [1], [0, 0, 1, 1], [], []>} : vector<8x512xf32>, vector<512x256xf32>, vector<8x256xf32> -> vector<8x256xf32>
    %c0_14 = arith.constant 0 : index
    %c0_15 = arith.constant 0 : index
    %14 = vector.load %arg7[%c0_14, %c0_15] : memref<1x256xf32, #tpu.memory_space<vmem>>, vector<1x256xf32>
    %15 = vector.broadcast %14 : vector<1x256xf32> to vector<8x256xf32>
    %16 = arith.addf %13, %15 : vector<8x256xf32>
    %cst_16 = arith.constant 0.000000e+00 : f32
    %17 = vector.broadcast %cst_16 : f32 to vector<8x256xf32>
    %18 = arith.maximumf %16, %17 : vector<8x256xf32>
    %c0_17 = arith.constant 0 : index
    %c0_18 = arith.constant 0 : index
    %19 = vector.load %arg8[%c0_17, %c0_18] : memref<256x128xf32, #tpu.memory_space<vmem>>, vector<256x128xf32>
    %cst_19 = arith.constant dense<0.000000e+00> : vector<8x128xf32>
    %20 = tpu.matmul %18, %19, %cst_19 {dimension_numbers = #tpu.dot_dimension_numbers<[1], [0], [0], [1], [0, 0, 1, 1], [], []>} : vector<8x256xf32>, vector<256x128xf32>, vector<8x128xf32> -> vector<8x128xf32>
    %c0_20 = arith.constant 0 : index
    %c0_21 = arith.constant 0 : index
    %21 = vector.load %arg9[%c0_20, %c0_21] : memref<1x128xf32, #tpu.memory_space<vmem>>, vector<1x128xf32>
    %22 = vector.broadcast %21 : vector<1x128xf32> to vector<8x128xf32>
    %23 = arith.addf %20, %22 : vector<8x128xf32>
    %cst_22 = arith.constant 0.000000e+00 : f32
    %24 = vector.broadcast %cst_22 : f32 to vector<8x128xf32>
    %25 = arith.maximumf %23, %24 : vector<8x128xf32>
    %c0_23 = arith.constant 0 : index
    %c0_24 = arith.constant 0 : index
    %26 = vector.load %arg10[%c0_23, %c0_24] : memref<128x8xf32, #tpu.memory_space<vmem>>, vector<128x8xf32>
    %cst_25 = arith.constant dense<0.000000e+00> : vector<8x8xf32>
    %27 = tpu.matmul %25, %26, %cst_25 {dimension_numbers = #tpu.dot_dimension_numbers<[1], [0], [0], [1], [0, 0, 1, 1], [], []>} : vector<8x128xf32>, vector<128x8xf32>, vector<8x8xf32> -> vector<8x8xf32>
    %c0_26 = arith.constant 0 : index
    %c0_27 = arith.constant 0 : index
    %28 = vector.load %arg11[%c0_26, %c0_27] : memref<1x8xf32, #tpu.memory_space<vmem>>, vector<1x8xf32>
    %29 = vector.broadcast %28 : vector<1x8xf32> to vector<8x8xf32>
    %30 = arith.addf %27, %29 : vector<8x8xf32>
    %c0_28 = arith.constant 0 : index
    %c0_29 = arith.constant 0 : index
    %31 = vector.load %arg12[%c0_28, %c0_29] : memref<8x8xf32, #tpu.memory_space<vmem>>, vector<8x8xf32>
    tpu.vector_store %arg12[%c0_28, %c0_29], %30 {strides = array<i32>} : memref<8x8xf32, #tpu.memory_space<vmem>>, vector<8x8xf32>,
    return
  }
  func.func @transform_0(%arg0: i32) -> (i32, i32) {
    %c0_i32 = arith.constant 0 : i32
    %c0_i32_0 = arith.constant 0 : i32
    return %arg0, %c0_i32 : i32, i32
  }
  func.func @transform_1(%arg0: i32) -> (i32, i32) {
    %c0_i32 = arith.constant 0 : i32
    %c0_i32_0 = arith.constant 0 : i32
    return %arg0, %c0_i32 : i32, i32
  }
  func.func @transform_2(%arg0: i32) -> (i32, i32) {
    %c0_i32 = arith.constant 0 : i32
    %c0_i32_0 = arith.constant 0 : i32
    %c0_i32_1 = arith.constant 0 : i32
    return %c0_i32, %c0_i32_0 : i32, i32
  }
  func.func @transform_3(%arg0: i32) -> (i32, i32) {
    %c0_i32 = arith.constant 0 : i32
    %c0_i32_0 = arith.constant 0 : i32
    %c0_i32_1 = arith.constant 0 : i32
    return %c0_i32, %c0_i32_0 : i32, i32
  }
  func.func @transform_4(%arg0: i32) -> (i32, i32) {
    %c0_i32 = arith.constant 0 : i32
    %c0_i32_0 = arith.constant 0 : i32
    %c0_i32_1 = arith.constant 0 : i32
    return %c0_i32, %c0_i32_0 : i32, i32
  }
  func.func @transform_5(%arg0: i32) -> (i32, i32) {
    %c0_i32 = arith.constant 0 : i32
    %c0_i32_0 = arith.constant 0 : i32
    %c0_i32_1 = arith.constant 0 : i32
    return %c0_i32, %c0_i32_0 : i32, i32
  }
  func.func @transform_6(%arg0: i32) -> (i32, i32) {
    %c0_i32 = arith.constant 0 : i32
    %c0_i32_0 = arith.constant 0 : i32
    %c0_i32_1 = arith.constant 0 : i32
    return %c0_i32, %c0_i32_0 : i32, i32
  }
  func.func @transform_7(%arg0: i32) -> (i32, i32) {
    %c0_i32 = arith.constant 0 : i32
    %c0_i32_0 = arith.constant 0 : i32
    %c0_i32_1 = arith.constant 0 : i32
    return %c0_i32, %c0_i32_0 : i32, i32
  }
  func.func @transform_8(%arg0: i32) -> (i32, i32) {
    %c0_i32 = arith.constant 0 : i32
    %c0_i32_0 = arith.constant 0 : i32
    %c0_i32_1 = arith.constant 0 : i32
    return %c0_i32, %c0_i32_0 : i32, i32
  }
  func.func @transform_9(%arg0: i32) -> (i32, i32) {
    %c0_i32 = arith.constant 0 : i32
    %c0_i32_0 = arith.constant 0 : i32
    %c0_i32_1 = arith.constant 0 : i32
    return %c0_i32, %c0_i32_0 : i32, i32
  }
  func.func @transform_10(%arg0: i32) -> (i32, i32) {
    %c0_i32 = arith.constant 0 : i32
    %c0_i32_0 = arith.constant 0 : i32
    %c0_i32_1 = arith.constant 0 : i32
    return %c0_i32, %c0_i32_0 : i32, i32
  }
  func.func @transform_11(%arg0: i32) -> (i32, i32) {
    %c0_i32 = arith.constant 0 : i32
    %c0_i32_0 = arith.constant 0 : i32
    return %arg0, %c0_i32 : i32, i32
  }
}

</mosaic_0001>

<llo_original>
// kernel: tpu_custom_call.1
$region0: #{tpu_custom_call.1}
  #allocation0 [shape = 'u32[]', space=smem, size = 0x4, offset = 0x4, fixed_abs, tag = 'smem constant byte address 0x4 - core index']
  #allocation1 [shape = 'u32[144,128]{1,0:T(1,128)}', space=vmem, size = 0x12000, scoped, tag = 'internal scratch']
  %s0 = inlined_call_operand.vmem [shape: f32[4,8], index: 0, kind: input, shape index: {}]
  %s1 = inlined_call_operand.vmem [shape: f32[4,8], index: 1, kind: input, shape index: {}]
  %s2 = inlined_call_operand.vmem [shape: f32[8,512], index: 2, kind: input, shape index: {}]
  %s3 = inlined_call_operand.vmem [shape: f32[8,512], index: 3, kind: input, shape index: {}]
  %s4 = inlined_call_operand.vmem [shape: f32[1,512], index: 4, kind: input, shape index: {}]
  %s5 = inlined_call_operand.hbm [shape: f32[512,256], index: 5, kind: input, shape index: {}]
  %s6 = inlined_call_operand.vmem [shape: f32[1,256], index: 6, kind: input, shape index: {}]
  %s7 = inlined_call_operand.hbm [shape: f32[256,128], index: 7, kind: input, shape index: {}]
  %s8 = inlined_call_operand.vmem [shape: f32[1,128], index: 8, kind: input, shape index: {}]
  %s9 = inlined_call_operand.vmem [shape: f32[128,8], index: 9, kind: input, shape index: {}]
  %s10 = inlined_call_operand.vmem [shape: f32[1,8], index: 10, kind: input, shape index: {}]
  %s11 = inlined_call_operand.hbm [shape: f32[4,8], index: 11, kind: output, shape index: {}]
  %s12 = sld [smem:[#allocation0]]
  $region62: #{tpu_custom_call.1} parent=0
    _
  %s14 = ssub.s32 1, %s12
  %s15 = scalar_select 0, %s14, %s12
  $region1: #{tpu_custom_call.1} parent=0
    #allocation2 [shape = 'u8[524288]{0}', space=vmem, size = 0x80000, scoped, tag = 'input window, operand 5, single buffered']
    #allocation3 [shape = 's32[1]{0}', space=sflag, size = 0x4, scoped, tag = 'scoped memory for tpu_custom_call.1']
    #allocation4 [shape = 's32[1]{0}', space=sflag, size = 0x4, scoped, tag = 'scoped memory for tpu_custom_call.1']
    #allocation5 [shape = 'u8[131072]{0}', space=vmem, size = 0x20000, scoped, tag = 'input window, operand 7, single buffered']
    #allocation6 [shape = 's32[1]{0}', space=sflag, size = 0x4, scoped, tag = 'scoped memory for tpu_custom_call.1']
    #allocation7 [shape = 'u8[4096]{0}', space=vmem, size = 0x1000, scoped, tag = 'output window, operand 0, single buffered']
    %16 = vsyncpa [#allocation3], 0
    %17 = vsyncpa [#allocation6], 0
    %18 = vsyncpa [#allocation4], 0
    // Predicated region
    $region2: #{tpu_custom_call.1} parent=1 // pred_check
      _
    $region3: #{tpu_custom_call.1} parent=1 // pred_check_branch
      %20 = sbr.rel (0) target = $region5
    $region4: #{tpu_custom_call.1} parent=1 // pred_region
      _
    $region5: #{tpu_custom_call.1} parent=1 // pred_fallthru
      _
    // Predicated region
    $region6: #{tpu_custom_call.1} parent=1 // pred_check
      _
    $region7: #{tpu_custom_call.1} parent=1 // pred_check_branch
      %22 = sbr.rel (0) target = $region9
    $region8: #{tpu_custom_call.1} parent=1 // pred_region
      _
    $region9: #{tpu_custom_call.1} parent=1 // pred_fallthru
      _
    // Predicated region
    $region10: #{tpu_custom_call.1} parent=1 // pred_check
      _
    $region11: #{tpu_custom_call.1} parent=1 // pred_check_branch
      %24 = sbr.rel (0) target = $region13
    $region12: #{tpu_custom_call.1} parent=1 // pred_region
      _
    $region13: #{tpu_custom_call.1} parent=1 // pred_fallthru
      _
    // Predicated region
    $region14: #{tpu_custom_call.1} parent=1 // pred_check
      _
    $region15: #{tpu_custom_call.1} parent=1 // pred_check_branch
      %26 = sbr.rel (0) target = $region17
    $region16: #{tpu_custom_call.1} parent=1 // pred_region
      _
    $region17: #{tpu_custom_call.1} parent=1 // pred_fallthru
      _
    // Predicated region
    $region18: #{tpu_custom_call.1} parent=1 // pred_check
      _
    $region19: #{tpu_custom_call.1} parent=1 // pred_check_branch
      %28 = sbr.rel (0) target = $region21
    $region20: #{tpu_custom_call.1} parent=1 // pred_region
      _
    $region21: #{tpu_custom_call.1} parent=1 // pred_fallthru
      _
    // Predicated region
    $region22: #{tpu_custom_call.1} parent=1 // pred_check
      _
    $region23: #{tpu_custom_call.1} parent=1 // pred_check_branch
      %30 = sbr.rel (0) target = $region25
    $region24: #{tpu_custom_call.1} parent=1 // pred_region
      %s32 = ssub.s32 16384, 16384
      %33 = vsyncadd [#allocation3], %s32
      %s34 = sshll.u32 [#allocation2], 4
      %s35 = int_to_ptr.vmem [resolvable:$true] %s34
      %40 = dma.hbm_to_vmem [thread:$0]  %s5, 16384, %s35, [#allocation3], 256, 256, 16
    $region25: #{tpu_custom_call.1} parent=1 // pred_fallthru
      _
    // Predicated region
    $region26: #{tpu_custom_call.1} parent=1 // pred_check
      _
    $region27: #{tpu_custom_call.1} parent=1 // pred_check_branch
      %42 = sbr.rel (0) target = $region29
    $region28: #{tpu_custom_call.1} parent=1 // pred_region
      _
    $region29: #{tpu_custom_call.1} parent=1 // pred_fallthru
      _
    // Predicated region
    $region30: #{tpu_custom_call.1} parent=1 // pred_check
      _
    $region31: #{tpu_custom_call.1} parent=1 // pred_check_branch
      %44 = sbr.rel (0) target = $region33
    $region32: #{tpu_custom_call.1} parent=1 // pred_region
      %s46 = ssub.s32 4096, 4096
      %47 = vsyncadd [#allocation6], %s46
      %s48 = sshll.u32 [#allocation5], 4
      %s49 = int_to_ptr.vmem [resolvable:$true] %s48
      %54 = dma.hbm_to_vmem [thread:$0]  %s7, 4096, %s49, [#allocation6], 128, 128, 8
    $region33: #{tpu_custom_call.1} parent=1 // pred_fallthru
      _
    // Predicated region
    $region34: #{tpu_custom_call.1} parent=1 // pred_check
      _
    $region35: #{tpu_custom_call.1} parent=1 // pred_check_branch
      %56 = sbr.rel (0) target = $region37
    $region36: #{tpu_custom_call.1} parent=1 // pred_region
      _
    $region37: #{tpu_custom_call.1} parent=1 // pred_fallthru
      _
    // Predicated region
    $region38: #{tpu_custom_call.1} parent=1 // pred_check
      _
    $region39: #{tpu_custom_call.1} parent=1 // pred_check_branch
      %58 = sbr.rel (0) target = $region41
    $region40: #{tpu_custom_call.1} parent=1 // pred_region
      _
    $region41: #{tpu_custom_call.1} parent=1 // pred_fallthru
      _
    // Predicated region
    $region42: #{tpu_custom_call.1} parent=1 // pred_check
      _
    $region43: #{tpu_custom_call.1} parent=1 // pred_check_branch
      %60 = sbr.rel (0) target = $region45
    $region44: #{tpu_custom_call.1} parent=1 // pred_region
      _
    $region45: #{tpu_custom_call.1} parent=1 // pred_fallthru
      _
    // Predicated region
    $region46: #{tpu_custom_call.1} parent=1 // pred_check
      _
    $region47: #{tpu_custom_call.1} parent=1 // pred_check_branch
      %62 = sbr.rel (0) target = $region49
    $region48: #{tpu_custom_call.1} parent=1 // pred_region
      %63 = dma.done [#allocation3], 16384
    $region49: #{tpu_custom_call.1} parent=1 // pred_fallthru
      _
    // Predicated region
    $region50: #{tpu_custom_call.1} parent=1 // pred_check
      _
    $region51: #{tpu_custom_call.1} parent=1 // pred_check_branch
      %65 = sbr.rel (0) target = $region53
    $region52: #{tpu_custom_call.1} parent=1 // pred_region
      %66 = dma.done [#allocation6], 4096
    $region53: #{tpu_custom_call.1} parent=1 // pred_fallthru
      _
    %v67 = vld [vmem:[%s0] sm:$0xff]
    %v68 = vld [vmem:[%s1] sm:$0xff]
    %v69 = vld [vmem:[%s2] sm:$0xff]
    %v70 = vld [vmem:[%s2 + $0x8] sm:$0xff]
    %v71 = vld [vmem:[%s2 + $0x10] sm:$0xff]
    %v72 = vld [vmem:[%s2 + $0x18] sm:$0xff]
    %v73 = vld [vmem:[%s3] sm:$0xff]
    %v74 = vld [vmem:[%s3 + $0x8] sm:$0xff]
    %v75 = vld [vmem:[%s3 + $0x10] sm:$0xff]
    %v76 = vld [vmem:[%s3 + $0x18] sm:$0xff]
    %vm77 = vcmask 64512
    %v79 = vsel %vm77, %v68, 0
    %81 = vmatprep.subr.mxu0 %v74
    %82 = vmatpush1.msra.mxu0 %v73
    %83 = vmatprep.subr.mxu0 0.0
    %84 = vmatpush1.msra.mxu0 0.0
    %85 = vmatprep.subr.mxu0 0.0
    %86 = vmatpush1.msra.mxu0 0.0
    %87 = vmatprep.subr.mxu0 0.0
    %88 = vmatpush1.msra.mxu0 0.0
    %89 = vmatprep.subr.mxu0 0.0
    %90 = vmatpush1.msra.mxu0 0.0
    %91 = vmatprep.subr.mxu0 0.0
    %92 = vmatpush1.msra.mxu0 0.0
    %93 = vmatprep.subr.mxu0 0.0
    %94 = vmatpush1.msra.mxu0 0.0
    %95 = vmatprep.subr.mxu0 0.0
    %96 = vmatpush1.msra.mxu0 0.0
    %97 = vmatprep.subr.mxu0 0.0
    %98 = vmatpush1.msra.mxu0 0.0
    %99 = vmatprep.subr.mxu0 0.0
    %100 = vmatpush1.msra.mxu0 0.0
    %101 = vmatprep.subr.mxu0 0.0
    %102 = vmatpush1.msra.mxu0 0.0
    %103 = vmatprep.subr.mxu0 0.0
    %104 = vmatpush1.msra.mxu0 0.0
    %105 = vmatprep.subr.mxu0 0.0
    %106 = vmatpush1.msra.mxu0 0.0
    %107 = vmatprep.subr.mxu0 0.0
    %108 = vmatpush1.msra.mxu0 0.0
    %109 = vmatprep.subr.mxu0 0.0
    %110 = vmatpush1.msra.mxu0 0.0
    %111 = vmatprep.subr.mxu0 0.0
    %112 = vmatpush1.msra.mxu0 0.0
    %113 = vmatprep.subr.mxu0 0.0
    %114 = vmatpush1.msra.mxu0 0.0
    %115 = vmatprep.subr.mxu0 0.0
    %116 = vmatpush1.msra.mxu0 0.0
    %117 = vmatprep.subr.mxu0 0.0
    %118 = vmatpush1.msra.mxu0 0.0
    %119 = vmatprep.subr.mxu0 0.0
    %120 = vmatpush1.msra.mxu0 0.0
    %121 = vmatprep.subr.mxu0 0.0
    %122 = vmatpush1.msra.mxu0 0.0
    %123 = vmatprep.subr.mxu0 0.0
    %124 = vmatpush1.msra.mxu0 0.0
    %125 = vmatprep.subr.mxu0 0.0
    %126 = vmatpush1.msra.mxu0 0.0
    %127 = vmatprep.subr.mxu0 0.0
    %128 = vmatpush1.msra.mxu0 0.0
    %129 = vmatprep.subr.mxu0 0.0
    %130 = vmatpush1.msra.mxu0 0.0
    %131 = vmatprep.subr.mxu0 0.0
    %132 = vmatpush1.msra.mxu0 0.0
    %133 = vmatprep.subr.mxu0 0.0
    %134 = vmatpush1.msra.mxu0 0.0
    %135 = vmatprep.subr.mxu0 0.0
    %136 = vmatpush1.msra.mxu0 0.0
    %137 = vmatprep.subr.mxu0 0.0
    %138 = vmatpush1.msra.mxu0 0.0
    %139 = vmatprep.subr.mxu0 0.0
    %140 = vmatpush1.msra.mxu0 0.0
    %141 = vmatprep.subr.mxu0 0.0
    %142 = vmatpush1.msra.mxu0 0.0
    %143 = vmatprep.subr.mxu0 0.0
    %144 = vmatpush1.msra.mxu0 0.0
    %145 = vmatprep.mubr.f32.mxu0 0.0
    %146 = vmatmul.mubr.f32.gmra.mrb[0].mxu0 %v79
    %v147 = vpop.f32.mrb[0].mxu0
    %v148 = vadd.f32 0.0, %v147
    %v149 = vpop.f32.mrb[0].mxu0
    %v150 = vadd.f32 0.0, %v149
    %151 = vdwg.mxu0
    %152 = vmatprep.subr.mxu0 %v76
    %153 = vmatpush1.msra.mxu0 %v75
    %154 = vmatprep.subr.mxu0 0.0
    %155 = vmatpush1.msra.mxu0 0.0
    %156 = vmatprep.subr.mxu0 0.0
    %157 = vmatpush1.msra.mxu0 0.0
    %158 = vmatprep.subr.mxu0 0.0
    %159 = vmatpush1.msra.mxu0 0.0
    %160 = vmatprep.subr.mxu0 0.0
    %161 = vmatpush1.msra.mxu0 0.0
    %162 = vmatprep.subr.mxu0 0.0
    %163 = vmatpush1.msra.mxu0 0.0
    %164 = vmatprep.subr.mxu0 0.0
    %165 = vmatpush1.msra.mxu0 0.0
    %166 = vmatprep.subr.mxu0 0.0
    %167 = vmatpush1.msra.mxu0 0.0
    %168 = vmatprep.subr.mxu0 0.0
    %169 = vmatpush1.msra.mxu0 0.0
    %170 = vmatprep.subr.mxu0 0.0
    %171 = vmatpush1.msra.mxu0 0.0
    %172 = vmatprep.subr.mxu0 0.0
    %173 = vmatpush1.msra.mxu0 0.0
    %174 = vmatprep.subr.mxu0 0.0
    %175 = vmatpush1.msra.mxu0 0.0
    %176 = vmatprep.subr.mxu0 0.0
    %177 = vmatpush1.msra.mxu0 0.0
    %178 = vmatprep.subr.mxu0 0.0
    %179 = vmatpush1.msra.mxu0 0.0
    %180 = vmatprep.subr.mxu0 0.0
    %181 = vmatpush1.msra.mxu0 0.0
    %182 = vmatprep.subr.mxu0 0.0
    %183 = vmatpush1.msra.mxu0 0.0
    %184 = vmatprep.subr.mxu0 0.0
    %185 = vmatpush1.msra.mxu0 0.0
    %186 = vmatprep.subr.mxu0 0.0
    %187 = vmatpush1.msra.mxu0 0.0
    %188 = vmatprep.subr.mxu0 0.0
    %189 = vmatpush1.msra.mxu0 0.0
    %190 = vmatprep.subr.mxu0 0.0
    %191 = vmatpush1.msra.mxu0 0.0
    %192 = vmatprep.subr.mxu0 0.0
    %193 = vmatpush1.msra.mxu0 0.0
    %194 = vmatprep.subr.mxu0 0.0
    %195 = vmatpush1.msra.mxu0 0.0
    %196 = vmatprep.subr.mxu0 0.0
    %197 = vmatpush1.msra.mxu0 0.0
    %198 = vmatprep.subr.mxu0 0.0
    %199 = vmatpush1.msra.mxu0 0.0
    %200 = vmatprep.subr.mxu0 0.0
    %201 = vmatpush1.msra.mxu0 0.0
    %202 = vmatprep.subr.mxu0 0.0
    %203 = vmatpush1.msra.mxu0 0.0
    %204 = vmatprep.subr.mxu0 0.0
    %205 = vmatpush1.msra.mxu0 0.0
    %206 = vmatprep.subr.mxu0 0.0
    %207 = vmatpush1.msra.mxu0 0.0
    %208 = vmatprep.subr.mxu0 0.0
    %209 = vmatpush1.msra.mxu0 0.0
    %210 = vmatprep.subr.mxu0 0.0
    %211 = vmatpush1.msra.mxu0 0.0
    %212 = vmatprep.subr.mxu0 0.0
    %213 = vmatpush1.msra.mxu0 0.0
    %214 = vmatprep.subr.mxu0 0.0
    %215 = vmatpush1.msra.mxu0 0.0
    %216 = vmatprep.mubr.f32.mxu0 0.0
    %217 = vmatmul.mubr.f32.gmra.mrb[0].mxu0 %v79
    %v218 = vpop.f32.mrb[0].mxu0
    %v219 = vadd.f32 0.0, %v218
    %v220 = vpop.f32.mrb[0].mxu0
    %v221 = vadd.f32 0.0, %v220
    %222 = vdwg.mxu0
    %v224 = vsel %vm77, %v67, 0
    %226 = vmatprep.subr.mxu0 %v70
    %227 = vmatpush1.msra.mxu0 %v69
    %228 = vmatprep.subr.mxu0 0.0
    %229 = vmatpush1.msra.mxu0 0.0
    %230 = vmatprep.subr.mxu0 0.0
    %231 = vmatpush1.msra.mxu0 0.0
    %232 = vmatprep.subr.mxu0 0.0
    %233 = vmatpush1.msra.mxu0 0.0
    %234 = vmatprep.subr.mxu0 0.0
    %235 = vmatpush1.msra.mxu0 0.0
    %236 = vmatprep.subr.mxu0 0.0
    %237 = vmatpush1.msra.mxu0 0.0
    %238 = vmatprep.subr.mxu0 0.0
    %239 = vmatpush1.msra.mxu0 0.0
    %240 = vmatprep.subr.mxu0 0.0
    %241 = vmatpush1.msra.mxu0 0.0
    %242 = vmatprep.subr.mxu0 0.0
    %243 = vmatpush1.msra.mxu0 0.0
    %244 = vmatprep.subr.mxu0 0.0
    %245 = vmatpush1.msra.mxu0 0.0
    %246 = vmatprep.subr.mxu0 0.0
    %247 = vmatpush1.msra.mxu0 0.0
    %248 = vmatprep.subr.mxu0 0.0
    %249 = vmatpush1.msra.mxu0 0.0
    %250 = vmatprep.subr.mxu0 0.0
    %251 = vmatpush1.msra.mxu0 0.0
    %252 = vmatprep.subr.mxu0 0.0
    %253 = vmatpush1.msra.mxu0 0.0
    %254 = vmatprep.subr.mxu0 0.0
    %255 = vmatpush1.msra.mxu0 0.0
    %256 = vmatprep.subr.mxu0 0.0
    %257 = vmatpush1.msra.mxu0 0.0
    %258 = vmatprep.subr.mxu0 0.0
    %259 = vmatpush1.msra.mxu0 0.0
    %260 = vmatprep.subr.mxu0 0.0
    %261 = vmatpush1.msra.mxu0 0.0
    %262 = vmatprep.subr.mxu0 0.0
    %263 = vmatpush1.msra.mxu0 0.0
    %264 = vmatprep.subr.mxu0 0.0
    %265 = vmatpush1.msra.mxu0 0.0
    %266 = vmatprep.subr.mxu0 0.0
    %267 = vmatpush1.msra.mxu0 0.0
    %268 = vmatprep.subr.mxu0 0.0
    %269 = vmatpush1.msra.mxu0 0.0
    %270 = vmatprep.subr.mxu0 0.0
    %271 = vmatpush1.msra.mxu0 0.0
    %272 = vmatprep.subr.mxu0 0.0
    %273 = vmatpush1.msra.mxu0 0.0
    %274 = vmatprep.subr.mxu0 0.0
    %275 = vmatpush1.msra.mxu0 0.0
    %276 = vmatprep.subr.mxu0 0.0
    %277 = vmatpush1.msra.mxu0 0.0
    %278 = vmatprep.subr.mxu0 0.0
    %279 = vmatpush1.msra.mxu0 0.0
    %280 = vmatprep.subr.mxu0 0.0
    %281 = vmatpush1.msra.mxu0 0.0
    %282 = vmatprep.subr.mxu0 0.0
    %283 = vmatpush1.msra.mxu0 0.0
    %284 = vmatprep.subr.mxu0 0.0
    %285 = vmatpush1.msra.mxu0 0.0
    %286 = vmatprep.subr.mxu0 0.0
    %287 = vmatpush1.msra.mxu0 0.0
    %288 = vmatprep.subr.mxu0 0.0
    %289 = vmatpush1.msra.mxu0 0.0
    %290 = vmatprep.mubr.f32.mxu0 0.0
    %291 = vmatmul.mubr.f32.gmra.mrb[0].mxu0 %v224
    %v292 = vpop.f32.mrb[0].mxu0
    %v293 = vadd.f32 %v148, %v292
    %v294 = vpop.f32.mrb[0].mxu0
    %v295 = vadd.f32 %v150, %v294
    %296 = vdwg.mxu0
    %297 = vmatprep.subr.mxu0 %v72
    %298 = vmatpush1.msra.mxu0 %v71
    %299 = vmatprep.subr.mxu0 0.0
    %300 = vmatpush1.msra.mxu0 0.0
    %301 = vmatprep.subr.mxu0 0.0
    %302 = vmatpush1.msra.mxu0 0.0
    %303 = vmatprep.subr.mxu0 0.0
    %304 = vmatpush1.msra.mxu0 0.0
    %305 = vmatprep.subr.mxu0 0.0
    %306 = vmatpush1.msra.mxu0 0.0
    %307 = vmatprep.subr.mxu0 0.0
    %308 = vmatpush1.msra.mxu0 0.0
    %309 = vmatprep.subr.mxu0 0.0
    %310 = vmatpush1.msra.mxu0 0.0
    %311 = vmatprep.subr.mxu0 0.0
    %312 = vmatpush1.msra.mxu0 0.0
    %313 = vmatprep.subr.mxu0 0.0
    %314 = vmatpush1.msra.mxu0 0.0
    %315 = vmatprep.subr.mxu0 0.0
    %316 = vmatpush1.msra.mxu0 0.0
    %317 = vmatprep.subr.mxu0 0.0
    %318 = vmatpush1.msra.mxu0 0.0
    %319 = vmatprep.subr.mxu0 0.0
    %320 = vmatpush1.msra.mxu0 0.0
    %321 = vmatprep.subr.mxu0 0.0
    %322 = vmatpush1.msra.mxu0 0.0
    %323 = vmatprep.subr.mxu0 0.0
    %324 = vmatpush1.msra.mxu0 0.0
    %325 = vmatprep.subr.mxu0 0.0
    %326 = vmatpush1.msra.mxu0 0.0
    %327 = vmatprep.subr.mxu0 0.0
    %328 = vmatpush1.msra.mxu0 0.0
    %329 = vmatprep.subr.mxu0 0.0
    %330 = vmatpush1.msra.mxu0 0.0
    %331 = vmatprep.subr.mxu0 0.0
    %332 = vmatpush1.msra.mxu0 0.0
    %333 = vmatprep.subr.mxu0 0.0
    %334 = vmatpush1.msra.mxu0 0.0
    %335 = vmatprep.subr.mxu0 0.0
    %336 = vmatpush1.msra.mxu0 0.0
    %337 = vmatprep.subr.mxu0 0.0
    %338 = vmatpush1.msra.mxu0 0.0
    %339 = vmatprep.subr.mxu0 0.0
    %340 = vmatpush1.msra.mxu0 0.0
    %341 = vmatprep.subr.mxu0 0.0
    %342 = vmatpush1.msra.mxu0 0.0
    %343 = vmatprep.subr.mxu0 0.0
    %344 = vmatpush1.msra.mxu0 0.0
    %345 = vmatprep.subr.mxu0 0.0
    %346 = vmatpush1.msra.mxu0 0.0
    %347 = vmatprep.subr.mxu0 0.0
    %348 = vmatpush1.msra.mxu0 0.0
    %349 = vmatprep.subr.mxu0 0.0
    %350 = vmatpush1.msra.mxu0 0.0
    %351 = vmatprep.subr.mxu0 0.0
    %352 = vmatpush1.msra.mxu0 0.0
    %353 = vmatprep.subr.mxu0 0.0
    %354 = vmatpush1.msra.mxu0 0.0
    %355 = vmatprep.subr.mxu0 0.0
    %356 = vmatpush1.msra.mxu0 0.0
    %357 = vmatprep.subr.mxu0 0.0
    %358 = vmatpush1.msra.mxu0 0.0
    %359 = vmatprep.subr.mxu0 0.0
    %360 = vmatpush1.msra.mxu0 0.0
    %361 = vmatprep.mubr.f32.mxu0 0.0
    %362 = vmatmul.mubr.f32.gmra.mrb[0].mxu0 %v224
    %v363 = vpop.f32.mrb[0].mxu0
    %v364 = vadd.f32 %v219, %v363
    %v365 = vpop.f32.mrb[0].mxu0
    %v366 = vadd.f32 %v221, %v365
    %367 = vdwg.mxu0
    %v368 = vld [vmem:[%s4] sm:$0xf]
    %v370 = vlaneseq
    %v371 = vshrl.u32 %v370, 7
    %v372 = vsub.s32 0, %v371
    %v373 = vrot.slane %v368, %v372
    %v374 = vlaneseq
    %v375 = vshrl.u32 %v374, 7
    %v376 = vsub.s32 1, %v375
    %v377 = vrot.slane %v368, %v376
    %v378 = vlaneseq
    %v379 = vshrl.u32 %v378, 7
    %v380 = vsub.s32 2, %v379
    %v381 = vrot.slane %v368, %v380
    %v382 = vlaneseq
    %v383 = vshrl.u32 %v382, 7
    %v384 = vsub.s32 3, %v383
    %v385 = vrot.slane %v368, %v384
    %v390 = vadd.f32 %v293, %v373
    %v391 = vadd.f32 %v295, %v377
    %v392 = vadd.f32 %v364, %v381
    %v393 = vadd.f32 %v366, %v385
    %v394 = vmax.f32 %v390, 0.0
    %v395 = vmax.f32 %v391, 0.0
    %v396 = vmax.f32 %v392, 0.0
    %v397 = vmax.f32 %v393, 0.0
    %v398 = vld [vmem:[#allocation2] sm:$0xff]
    %v399 = vld [vmem:[#allocation2 + $0x8] sm:$0xff]
    %v400 = vld [vmem:[#allocation2 + $0x10] sm:$0xff]
    %v401 = vld [vmem:[#allocation2 + $0x18] sm:$0xff]
    %v402 = vld [vmem:[#allocation2 + $0x20] sm:$0xff]
    %v403 = vld [vmem:[#allocation2 + $0x28] sm:$0xff]
    %v404 = vld [vmem:[#allocation2 + $0x30] sm:$0xff]
    %v405 = vld [vmem:[#allocation2 + $0x38] sm:$0xff]
    %v406 = vld [vmem:[#allocation2 + $0x40] sm:$0xff]
    %v407 = vld [vmem:[#allocation2 + $0x48] sm:$0xff]
    %v408 = vld [vmem:[#allocation2 + $0x50] sm:$0xff]
    %v409 = vld [vmem:[#allocation2 + $0x58] sm:$0xff]
    %v410 = vld [vmem:[#allocation2 + $0x60] sm:$0xff]
    %v411 = vld [vmem:[#allocation2 + $0x68] sm:$0xff]
    %v412 = vld [vmem:[#allocation2 + $0x70] sm:$0xff]
    %v413 = vld [vmem:[#allocation2 + $0x78] sm:$0xff]
    %v414 = vld [vmem:[#allocation2 + $0x80] sm:$0xff]
    %v415 = vld [vmem:[#allocation2 + $0x88] sm:$0xff]
    %v416 = vld [vmem:[#allocation2 + $0x90] sm:$0xff]
    %v417 = vld [vmem:[#allocation2 + $0x98] sm:$0xff]
    %v418 = vld [vmem:[#allocation2 + $0xa0] sm:$0xff]
    %v419 = vld [vmem:[#allocation2 + $0xa8] sm:$0xff]
    %v420 = vld [vmem:[#allocation2 + $0xb0] sm:$0xff]
    %v421 = vld [vmem:[#allocation2 + $0xb8] sm:$0xff]
    %v422 = vld [vmem:[#allocation2 + $0xc0] sm:$0xff]
    %v423 = vld [vmem:[#allocation2 + $0xc8] sm:$0xff]
    %v424 = vld [vmem:[#allocation2 + $0xd0] sm:$0xff]
    %v425 = vld [vmem:[#allocation2 + $0xd8] sm:$0xff]
    %v426 = vld [vmem:[#allocation2 + $0xe0] sm:$0xff]
    %v427 = vld [vmem:[#allocation2 + $0xe8] sm:$0xff]
    %v428 = vld [vmem:[#allocation2 + $0xf0] sm:$0xff]
    %v429 = vld [vmem:[#allocation2 + $0xf8] sm:$0xff]
    %v430 = vld [vmem:[#allocation2 + $0x100] sm:$0xff]
    %v431 = vld [vmem:[#allocation2 + $0x108] sm:$0xff]
    %v432 = vld [vmem:[#allocation2 + $0x110] sm:$0xff]
    %v433 = vld [vmem:[#allocation2 + $0x118] sm:$0xff]
    %v434 = vld [vmem:[#allocation2 + $0x120] sm:$0xff]
    %v435 = vld [vmem:[#allocation2 + $0x128] sm:$0xff]
    %v436 = vld [vmem:[#allocation2 + $0x130] sm:$0xff]
    %v437 = vld [vmem:[#allocation2 + $0x138] sm:$0xff]
    %v438 = vld [vmem:[#allocation2 + $0x140] sm:$0xff]
    %v439 = vld [vmem:[#allocation2 + $0x148] sm:$0xff]
    %v440 = vld [vmem:[#allocation2 + $0x150] sm:$0xff]
    %v441 = vld [vmem:[#allocation2 + $0x158] sm:$0xff]
    %v442 = vld [vmem:[#allocation2 + $0x160] sm:$0xff]
    %v443 = vld [vmem:[#allocation2 + $0x168] sm:$0xff]
    %v444 = vld [vmem:[#allocation2 + $0x170] sm:$0xff]
    %v445 = vld [vmem:[#allocation2 + $0x178] sm:$0xff]
    %v446 = vld [vmem:[#allocation2 + $0x180] sm:$0xff]
    %v447 = vld [vmem:[#allocation2 + $0x188] sm:$0xff]
    %v448 = vld [vmem:[#allocation2 + $0x190] sm:$0xff]
    %v449 = vld [vmem:[#allocation2 + $0x198] sm:$0xff]
    %v450 = vld [vmem:[#allocation2 + $0x1a0] sm:$0xff]
    %v451 = vld [vmem:[#allocation2 + $0x1a8] sm:$0xff]
    %v452 = vld [vmem:[#allocation2 + $0x1b0] sm:$0xff]
    %v453 = vld [vmem:[#allocation2 + $0x1b8] sm:$0xff]
    %v454 = vld [vmem:[#allocation2 + $0x1c0] sm:$0xff]
    %v455 = vld [vmem:[#allocation2 + $0x1c8] sm:$0xff]
    %v456 = vld [vmem:[#allocation2 + $0x1d0] sm:$0xff]
    %v457 = vld [vmem:[#allocation2 + $0x1d8] sm:$0xff]
    %v458 = vld [vmem:[#allocation2 + $0x1e0] sm:$0xff]
    %v459 = vld [vmem:[#allocation2 + $0x1e8] sm:$0xff]
    %v460 = vld [vmem:[#allocation2 + $0x1f0] sm:$0xff]
    %v461 = vld [vmem:[#allocation2 + $0x1f8] sm:$0xff]
    %v462 = vld [vmem:[#allocation2 + $0x200] sm:$0xff]
    %v463 = vld [vmem:[#allocation2 + $0x208] sm:$0xff]
    %v464 = vld [vmem:[#allocation2 + $0x210] sm:$0xff]
    %v465 = vld [vmem:[#allocation2 + $0x218] sm:$0xff]
    %v466 = vld [vmem:[#allocation2 + $0x220] sm:$0xff]
    %v467 = vld [vmem:[#allocation2 + $0x228] sm:$0xff]
    %v468 = vld [vmem:[#allocation2 + $0x230] sm:$0xff]
    %v469 = vld [vmem:[#allocation2 + $0x238] sm:$0xff]
    %v470 = vld [vmem:[#allocation2 + $0x240] sm:$0xff]
    %v471 = vld [vmem:[#allocation2 + $0x248] sm:$0xff]
    %v472 = vld [vmem:[#allocation2 + $0x250] sm:$0xff]
    %v473 = vld [vmem:[#allocation2 + $0x258] sm:$0xff]
    %v474 = vld [vmem:[#allocation2 + $0x260] sm:$0xff]
    %v475 = vld [vmem:[#allocation2 + $0x268] sm:$0xff]
    %v476 = vld [vmem:[#allocation2 + $0x270] sm:$0xff]
    %v477 = vld [vmem:[#allocation2 + $0x278] sm:$0xff]
    %v478 = vld [vmem:[#allocation2 + $0x280] sm:$0xff]
    %v479 = vld [vmem:[#allocation2 + $0x288] sm:$0xff]
    %v480 = vld [vmem:[#allocation2 + $0x290] sm:$0xff]
    %v481 = vld [vmem:[#allocation2 + $0x298] sm:$0xff]
    %v482 = vld [vmem:[#allocation2 + $0x2a0] sm:$0xff]
    %v483 = vld [vmem:[#allocation2 + $0x2a8] sm:$0xff]
    %v484 = vld [vmem:[#allocation2 + $0x2b0] sm:$0xff]
    %v485 = vld [vmem:[#allocation2 + $0x2b8] sm:$0xff]
    %v486 = vld [vmem:[#allocation2 + $0x2c0] sm:$0xff]
    %v487 = vld [vmem:[#allocation2 + $0x2c8] sm:$0xff]
    %v488 = vld [vmem:[#allocation2 + $0x2d0] sm:$0xff]
    %v489 = vld [vmem:[#allocation2 + $0x2d8] sm:$0xff]
    %v490 = vld [vmem:[#allocation2 + $0x2e0] sm:$0xff]
    %v491 = vld [vmem:[#allocation2 + $0x2e8] sm:$0xff]
    %v492 = vld [vmem:[#allocation2 + $0x2f0] sm:$0xff]
    %v493 = vld [vmem:[#allocation2 + $0x2f8] sm:$0xff]
    %v494 = vld [vmem:[#allocation2 + $0x300] sm:$0xff]
    %v495 = vld [vmem:[#allocation2 + $0x308] sm:$0xff]
    %v496 = vld [vmem:[#allocation2 + $0x310] sm:$0xff]
    %v497 = vld [vmem:[#allocation2 + $0x318] sm:$0xff]
    %v498 = vld [vmem:[#allocation2 + $0x320] sm:$0xff]
    %v499 = vld [vmem:[#allocation2 + $0x328] sm:$0xff]
    %v500 = vld [vmem:[#allocation2 + $0x330] sm:$0xff]
    %v501 = vld [vmem:[#allocation2 + $0x338] sm:$0xff]
    %v502 = vld [vmem:[#allocation2 + $0x340] sm:$0xff]
    %v503 = vld [vmem:[#allocation2 + $0x348] sm:$0xff]
    %v504 = vld [vmem:[#allocation2 + $0x350] sm:$0xff]
    %v505 = vld [vmem:[#allocation2 + $0x358] sm:$0xff]
    %v506 = vld [vmem:[#allocation2 + $0x360] sm:$0xff]
    %v507 = vld [vmem:[#allocation2 + $0x368] sm:$0xff]
    %v508 = vld [vmem:[#allocation2 + $0x370] sm:$0xff]
    %v509 = vld [vmem:[#allocation2 + $0x378] sm:$0xff]
    %v510 = vld [vmem:[#allocation2 + $0x380] sm:$0xff]
    %v511 = vld [vmem:[#allocation2 + $0x388] sm:$0xff]
    %v512 = vld [vmem:[#allocation2 + $0x390] sm:$0xff]
    %v513 = vld [vmem:[#allocation2 + $0x398] sm:$0xff]
    %v514 = vld [vmem:[#allocation2 + $0x3a0] sm:$0xff]
    %v515 = vld [vmem:[#allocation2 + $0x3a8] sm:$0xff]
    %v516 = vld [vmem:[#allocation2 + $0x3b0] sm:$0xff]
    %v517 = vld [vmem:[#allocation2 + $0x3b8] sm:$0xff]
    %v518 = vld [vmem:[#allocation2 + $0x3c0] sm:$0xff]
    %v519 = vld [vmem:[#allocation2 + $0x3c8] sm:$0xff]
    %v520 = vld [vmem:[#allocation2 + $0x3d0] sm:$0xff]
    %v521 = vld [vmem:[#allocation2 + $0x3d8] sm:$0xff]
    %v522 = vld [vmem:[#allocation2 + $0x3e0] sm:$0xff]
    %v523 = vld [vmem:[#allocation2 + $0x3e8] sm:$0xff]
    %v524 = vld [vmem:[#allocation2 + $0x3f0] sm:$0xff]
    %v525 = vld [vmem:[#allocation2 + $0x3f8] sm:$0xff]
    %v526 = vld [vmem:[%s6] sm:$0x3]
    %v528 = vlaneseq
    %v529 = vshrl.u32 %v528, 7
    %v530 = vsub.s32 0, %v529
    %v531 = vrot.slane %v526, %v530
    %v532 = vlaneseq
    %v533 = vshrl.u32 %v532, 7
    %v534 = vsub.s32 1, %v533
    %v535 = vrot.slane %v526, %v534
    %538 = vmatprep.subr.mxu0 %v399
    %539 = vmatpush1.msra.mxu0 %v398
    %540 = vmatprep.subr.mxu0 %v401
    %541 = vmatpush1.msra.mxu0 %v400
    %542 = vmatprep.subr.mxu0 %v403
    %543 = vmatpush1.msra.mxu0 %v402
    %544 = vmatprep.subr.mxu0 %v405
    %545 = vmatpush1.msra.mxu0 %v404
    %546 = vmatprep.subr.mxu0 %v407
    %547 = vmatpush1.msra.mxu0 %v406
    %548 = vmatprep.subr.mxu0 %v409
    %549 = vmatpush1.msra.mxu0 %v408
    %550 = vmatprep.subr.mxu0 %v411
    %551 = vmatpush1.msra.mxu0 %v410
    %552 = vmatprep.subr.mxu0 %v413
    %553 = vmatpush1.msra.mxu0 %v412
    %554 = vmatprep.subr.mxu0 %v415
    %555 = vmatpush1.msra.mxu0 %v414
    %556 = vmatprep.subr.mxu0 %v417
    %557 = vmatpush1.msra.mxu0 %v416
    %558 = vmatprep.subr.mxu0 %v419
    %559 = vmatpush1.msra.mxu0 %v418
    %560 = vmatprep.subr.mxu0 %v421
    %561 = vmatpush1.msra.mxu0 %v420
    %562 = vmatprep.subr.mxu0 %v423
    %563 = vmatpush1.msra.mxu0 %v422
    %564 = vmatprep.subr.mxu0 %v425
    %565 = vmatpush1.msra.mxu0 %v424
    %566 = vmatprep.subr.mxu0 %v427
    %567 = vmatpush1.msra.mxu0 %v426
    %568 = vmatprep.subr.mxu0 %v429
    %569 = vmatpush1.msra.mxu0 %v428
    %570 = vmatprep.subr.mxu0 %v431
    %571 = vmatpush1.msra.mxu0 %v430
    %572 = vmatprep.subr.mxu0 %v433
    %573 = vmatpush1.msra.mxu0 %v432
    %574 = vmatprep.subr.mxu0 %v435
    %575 = vmatpush1.msra.mxu0 %v434
    %576 = vmatprep.subr.mxu0 %v437
    %577 = vmatpush1.msra.mxu0 %v436
    %578 = vmatprep.subr.mxu0 %v439
    %579 = vmatpush1.msra.mxu0 %v438
    %580 = vmatprep.subr.mxu0 %v441
    %581 = vmatpush1.msra.mxu0 %v440
    %582 = vmatprep.subr.mxu0 %v443
    %583 = vmatpush1.msra.mxu0 %v442
    %584 = vmatprep.subr.mxu0 %v445
    %585 = vmatpush1.msra.mxu0 %v444
    %586 = vmatprep.subr.mxu0 %v447
    %587 = vmatpush1.msra.mxu0 %v446
    %588 = vmatprep.subr.mxu0 %v449
    %589 = vmatpush1.msra.mxu0 %v448
    %590 = vmatprep.subr.mxu0 %v451
    %591 = vmatpush1.msra.mxu0 %v450
    %592 = vmatprep.subr.mxu0 %v453
    %593 = vmatpush1.msra.mxu0 %v452
    %594 = vmatprep.subr.mxu0 %v455
    %595 = vmatpush1.msra.mxu0 %v454
    %596 = vmatprep.subr.mxu0 %v457
    %597 = vmatpush1.msra.mxu0 %v456
    %598 = vmatprep.subr.mxu0 %v459
    %599 = vmatpush1.msra.mxu0 %v458
    %600 = vmatprep.subr.mxu0 %v461
    %601 = vmatpush1.msra.mxu0 %v460
    %602 = vmatprep.mubr.f32.mxu0 %v395
    %603 = vmatmul.mubr.f32.gmra.mrb[0].mxu0 %v394
    %v604 = vpop.f32.mrb[0].mxu0
    %v605 = vadd.f32 %v531, %v604
    %v606 = vpop.f32.mrb[0].mxu0
    %v607 = vadd.f32 %v535, %v606
    %608 = vdwg.mxu0
    %609 = vmatprep.subr.mxu0 %v463
    %610 = vmatpush1.msra.mxu0 %v462
    %611 = vmatprep.subr.mxu0 %v465
    %612 = vmatpush1.msra.mxu0 %v464
    %613 = vmatprep.subr.mxu0 %v467
    %614 = vmatpush1.msra.mxu0 %v466
    %615 = vmatprep.subr.mxu0 %v469
    %616 = vmatpush1.msra.mxu0 %v468
    %617 = vmatprep.subr.mxu0 %v471
    %618 = vmatpush1.msra.mxu0 %v470
    %619 = vmatprep.subr.mxu0 %v473
    %620 = vmatpush1.msra.mxu0 %v472
    %621 = vmatprep.subr.mxu0 %v475
    %622 = vmatpush1.msra.mxu0 %v474
    %623 = vmatprep.subr.mxu0 %v477
    %624 = vmatpush1.msra.mxu0 %v476
    %625 = vmatprep.subr.mxu0 %v479
    %626 = vmatpush1.msra.mxu0 %v478
    %627 = vmatprep.subr.mxu0 %v481
    %628 = vmatpush1.msra.mxu0 %v480
    %629 = vmatprep.subr.mxu0 %v483
    %630 = vmatpush1.msra.mxu0 %v482
    %631 = vmatprep.subr.mxu0 %v485
    %632 = vmatpush1.msra.mxu0 %v484
    %633 = vmatprep.subr.mxu0 %v487
    %634 = vmatpush1.msra.mxu0 %v486
    %635 = vmatprep.subr.mxu0 %v489
    %636 = vmatpush1.msra.mxu0 %v488
    %637 = vmatprep.subr.mxu0 %v491
    %638 = vmatpush1.msra.mxu0 %v490
    %639 = vmatprep.subr.mxu0 %v493
    %640 = vmatpush1.msra.mxu0 %v492
    %641 = vmatprep.subr.mxu0 %v495
    %642 = vmatpush1.msra.mxu0 %v494
    %643 = vmatprep.subr.mxu0 %v497
    %644 = vmatpush1.msra.mxu0 %v496
    %645 = vmatprep.subr.mxu0 %v499
    %646 = vmatpush1.msra.mxu0 %v498
    %647 = vmatprep.subr.mxu0 %v501
    %648 = vmatpush1.msra.mxu0 %v500
    %649 = vmatprep.subr.mxu0 %v503
    %650 = vmatpush1.msra.mxu0 %v502
    %651 = vmatprep.subr.mxu0 %v505
    %652 = vmatpush1.msra.mxu0 %v504
    %653 = vmatprep.subr.mxu0 %v507
    %654 = vmatpush1.msra.mxu0 %v506
    %655 = vmatprep.subr.mxu0 %v509
    %656 = vmatpush1.msra.mxu0 %v508
    %657 = vmatprep.subr.mxu0 %v511
    %658 = vmatpush1.msra.mxu0 %v510
    %659 = vmatprep.subr.mxu0 %v513
    %660 = vmatpush1.msra.mxu0 %v512
    %661 = vmatprep.subr.mxu0 %v515
    %662 = vmatpush1.msra.mxu0 %v514
    %663 = vmatprep.subr.mxu0 %v517
    %664 = vmatpush1.msra.mxu0 %v516
    %665 = vmatprep.subr.mxu0 %v519
    %666 = vmatpush1.msra.mxu0 %v518
    %667 = vmatprep.subr.mxu0 %v521
    %668 = vmatpush1.msra.mxu0 %v520
    %669 = vmatprep.subr.mxu0 %v523
    %670 = vmatpush1.msra.mxu0 %v522
    %671 = vmatprep.subr.mxu0 %v525
    %672 = vmatpush1.msra.mxu0 %v524
    %673 = vmatprep.mubr.f32.mxu0 %v397
    %674 = vmatmul.mubr.f32.gmra.mrb[0].mxu0 %v396
    %v675 = vpop.f32.mrb[0].mxu0
    %v676 = vadd.f32 %v605, %v675
    %v677 = vpop.f32.mrb[0].mxu0
    %v678 = vadd.f32 %v607, %v677
    %679 = vdwg.mxu0
    %v680 = vmax.f32 %v676, 0.0
    %v681 = vmax.f32 %v678, 0.0
    %v682 = vld [vmem:[#allocation5] sm:$0xff]
    %v683 = vld [vmem:[#allocation5 + $0x8] sm:$0xff]
    %v684 = vld [vmem:[#allocation5 + $0x10] sm:$0xff]
    %v685 = vld [vmem:[#allocation5 + $0x18] sm:$0xff]
    %v686 = vld [vmem:[#allocation5 + $0x20] sm:$0xff]
    %v687 = vld [vmem:[#allocation5 + $0x28] sm:$0xff]
    %v688 = vld [vmem:[#allocation5 + $0x30] sm:$0xff]
    %v689 = vld [vmem:[#allocation5 + $0x38] sm:$0xff]
    %v690 = vld [vmem:[#allocation5 + $0x40] sm:$0xff]
    %v691 = vld [vmem:[#allocation5 + $0x48] sm:$0xff]
    %v692 = vld [vmem:[#allocation5 + $0x50] sm:$0xff]
    %v693 = vld [vmem:[#allocation5 + $0x58] sm:$0xff]
    %v694 = vld [vmem:[#allocation5 + $0x60] sm:$0xff]
    %v695 = vld [vmem:[#allocation5 + $0x68] sm:$0xff]
    %v696 = vld [vmem:[#allocation5 + $0x70] sm:$0xff]
    %v697 = vld [vmem:[#allocation5 + $0x78] sm:$0xff]
    %v698 = vld [vmem:[#allocation5 + $0x80] sm:$0xff]
    %v699 = vld [vmem:[#allocation5 + $0x88] sm:$0xff]
    %v700 = vld [vmem:[#allocation5 + $0x90] sm:$0xff]
    %v701 = vld [vmem:[#allocation5 + $0x98] sm:$0xff]
    %v702 = vld [vmem:[#allocation5 + $0xa0] sm:$0xff]
    %v703 = vld [vmem:[#allocation5 + $0xa8] sm:$0xff]
    %v704 = vld [vmem:[#allocation5 + $0xb0] sm:$0xff]
    %v705 = vld [vmem:[#allocation5 + $0xb8] sm:$0xff]
    %v706 = vld [vmem:[#allocation5 + $0xc0] sm:$0xff]
    %v707 = vld [vmem:[#allocation5 + $0xc8] sm:$0xff]
    %v708 = vld [vmem:[#allocation5 + $0xd0] sm:$0xff]
    %v709 = vld [vmem:[#allocation5 + $0xd8] sm:$0xff]
    %v710 = vld [vmem:[#allocation5 + $0xe0] sm:$0xff]
    %v711 = vld [vmem:[#allocation5 + $0xe8] sm:$0xff]
    %v712 = vld [vmem:[#allocation5 + $0xf0] sm:$0xff]
    %v713 = vld [vmem:[#allocation5 + $0xf8] sm:$0xff]
    %v714 = vld [vmem:[%s8] sm:$0x1]
    %v716 = vlaneseq
    %v717 = vshrl.u32 %v716, 7
    %v718 = vsub.s32 0, %v717
    %v719 = vrot.slane %v714, %v718
    %721 = vmatprep.subr.mxu0 0.0
    %722 = vmatpush1.msra.mxu0 %v682
    %723 = vmatprep.subr.mxu0 0.0
    %724 = vmatpush1.msra.mxu0 %v683
    %725 = vmatprep.subr.mxu0 0.0
    %726 = vmatpush1.msra.mxu0 %v684
    %727 = vmatprep.subr.mxu0 0.0
    %728 = vmatpush1.msra.mxu0 %v685
    %729 = vmatprep.subr.mxu0 0.0
    %730 = vmatpush1.msra.mxu0 %v686
    %731 = vmatprep.subr.mxu0 0.0
    %732 = vmatpush1.msra.mxu0 %v687
    %733 = vmatprep.subr.mxu0 0.0
    %734 = vmatpush1.msra.mxu0 %v688
    %735 = vmatprep.subr.mxu0 0.0
    %736 = vmatpush1.msra.mxu0 %v689
    %737 = vmatprep.subr.mxu0 0.0
    %738 = vmatpush1.msra.mxu0 %v690
    %739 = vmatprep.subr.mxu0 0.0
    %740 = vmatpush1.msra.mxu0 %v691
    %741 = vmatprep.subr.mxu0 0.0
    %742 = vmatpush1.msra.mxu0 %v692
    %743 = vmatprep.subr.mxu0 0.0
    %744 = vmatpush1.msra.mxu0 %v693
    %745 = vmatprep.subr.mxu0 0.0
    %746 = vmatpush1.msra.mxu0 %v694
    %747 = vmatprep.subr.mxu0 0.0
    %748 = vmatpush1.msra.mxu0 %v695
    %749 = vmatprep.subr.mxu0 0.0
    %750 = vmatpush1.msra.mxu0 %v696
    %751 = vmatprep.subr.mxu0 0.0
    %752 = vmatpush1.msra.mxu0 %v697
    %753 = vmatprep.subr.mxu0 0.0
    %754 = vmatpush1.msra.mxu0 %v698
    %755 = vmatprep.subr.mxu0 0.0
    %756 = vmatpush1.msra.mxu0 %v699
    %757 = vmatprep.subr.mxu0 0.0
    %758 = vmatpush1.msra.mxu0 %v700
    %759 = vmatprep.subr.mxu0 0.0
    %760 = vmatpush1.msra.mxu0 %v701
    %761 = vmatprep.subr.mxu0 0.0
    %762 = vmatpush1.msra.mxu0 %v702
    %763 = vmatprep.subr.mxu0 0.0
    %764 = vmatpush1.msra.mxu0 %v703
    %765 = vmatprep.subr.mxu0 0.0
    %766 = vmatpush1.msra.mxu0 %v704
    %767 = vmatprep.subr.mxu0 0.0
    %768 = vmatpush1.msra.mxu0 %v705
    %769 = vmatprep.subr.mxu0 0.0
    %770 = vmatpush1.msra.mxu0 %v706
    %771 = vmatprep.subr.mxu0 0.0
    %772 = vmatpush1.msra.mxu0 %v707
    %773 = vmatprep.subr.mxu0 0.0
    %774 = vmatpush1.msra.mxu0 %v708
    %775 = vmatprep.subr.mxu0 0.0
    %776 = vmatpush1.msra.mxu0 %v709
    %777 = vmatprep.subr.mxu0 0.0
    %778 = vmatpush1.msra.mxu0 %v710
    %779 = vmatprep.subr.mxu0 0.0
    %780 = vmatpush1.msra.mxu0 %v711
    %781 = vmatprep.subr.mxu0 0.0
    %782 = vmatpush1.msra.mxu0 %v712
    %783 = vmatprep.subr.mxu0 0.0
    %784 = vmatpush1.msra.mxu0 %v713
    %785 = vmatprep.mubr.f32.mxu0 %v681
    %786 = vmatmul.mubr.f32.gmra.mrb[0].mxu0 %v680
    %v787 = vpop.f32.mrb[0].mxu0
    %v788 = vadd.f32 %v719, %v787
    %v789 = vpop.f32.mrb[0].mxu0
    %790 = vdwg.mxu0
    %v791 = vmax.f32 %v788, 0.0
    %v792 = vld [vmem:[%s9] sm:$0xff]
    %v793 = vld [vmem:[%s9 + $0x8] sm:$0xff]
    %v794 = vld [vmem:[%s9 + $0x10] sm:$0xff]
    %v795 = vld [vmem:[%s9 + $0x18] sm:$0xff]
    %v796 = vld [vmem:[%s9 + $0x20] sm:$0xff]
    %v797 = vld [vmem:[%s9 + $0x28] sm:$0xff]
    %v798 = vld [vmem:[%s9 + $0x30] sm:$0xff]
    %v799 = vld [vmem:[%s9 + $0x38] sm:$0xff]
    %v800 = vld [vmem:[%s9 + $0x40] sm:$0xff]
    %v801 = vld [vmem:[%s9 + $0x48] sm:$0xff]
    %v802 = vld [vmem:[%s9 + $0x50] sm:$0xff]
    %v803 = vld [vmem:[%s9 + $0x58] sm:$0xff]
    %v804 = vld [vmem:[%s9 + $0x60] sm:$0xff]
    %v805 = vld [vmem:[%s9 + $0x68] sm:$0xff]
    %v806 = vld [vmem:[%s9 + $0x70] sm:$0xff]
    %v807 = vld [vmem:[%s9 + $0x78] sm:$0xff]
    %v808 = vld [vmem:[%s10] sm:$0x1]
    %v810 = vlaneseq
    %v811 = vshrl.u32 %v810, 7
    %v812 = vsub.s32 0, %v811
    %v813 = vrot.slane %v808, %v812
    %815 = vmatprep.subr.mxu0 0.0
    %816 = vmatpush1.msra.mxu0 %v792
    %817 = vmatprep.subr.mxu0 0.0
    %818 = vmatpush1.msra.mxu0 %v793
    %819 = vmatprep.subr.mxu0 0.0
    %820 = vmatpush1.msra.mxu0 %v794
    %821 = vmatprep.subr.mxu0 0.0
    %822 = vmatpush1.msra.mxu0 %v795
    %823 = vmatprep.subr.mxu0 0.0
    %824 = vmatpush1.msra.mxu0 %v796
    %825 = vmatprep.subr.mxu0 0.0
    %826 = vmatpush1.msra.mxu0 %v797
    %827 = vmatprep.subr.mxu0 0.0
    %828 = vmatpush1.msra.mxu0 %v798
    %829 = vmatprep.subr.mxu0 0.0
    %830 = vmatpush1.msra.mxu0 %v799
    %831 = vmatprep.subr.mxu0 0.0
    %832 = vmatpush1.msra.mxu0 %v800
    %833 = vmatprep.subr.mxu0 0.0
    %834 = vmatpush1.msra.mxu0 %v801
    %835 = vmatprep.subr.mxu0 0.0
    %836 = vmatpush1.msra.mxu0 %v802
    %837 = vmatprep.subr.mxu0 0.0
    %838 = vmatpush1.msra.mxu0 %v803
    %839 = vmatprep.subr.mxu0 0.0
    %840 = vmatpush1.msra.mxu0 %v804
    %841 = vmatprep.subr.mxu0 0.0
    %842 = vmatpush1.msra.mxu0 %v805
    %843 = vmatprep.subr.mxu0 0.0
    %844 = vmatpush1.msra.mxu0 %v806
    %845 = vmatprep.subr.mxu0 0.0
    %846 = vmatpush1.msra.mxu0 %v807
    %847 = vmatprep.subr.mxu0 0.0
    %848 = vmatpush1.msra.mxu0 0.0
    %849 = vmatprep.subr.mxu0 0.0
    %850 = vmatpush1.msra.mxu0 0.0
    %851 = vmatprep.subr.mxu0 0.0
    %852 = vmatpush1.msra.mxu0 0.0
    %853 = vmatprep.subr.mxu0 0.0
    %854 = vmatpush1.msra.mxu0 0.0
    %855 = vmatprep.subr.mxu0 0.0
    %856 = vmatpush1.msra.mxu0 0.0
    %857 = vmatprep.subr.mxu0 0.0
    %858 = vmatpush1.msra.mxu0 0.0
    %859 = vmatprep.subr.mxu0 0.0
    %860 = vmatpush1.msra.mxu0 0.0
    %861 = vmatprep.subr.mxu0 0.0
    %862 = vmatpush1.msra.mxu0 0.0
    %863 = vmatprep.subr.mxu0 0.0
    %864 = vmatpush1.msra.mxu0 0.0
    %865 = vmatprep.subr.mxu0 0.0
    %866 = vmatpush1.msra.mxu0 0.0
    %867 = vmatprep.subr.mxu0 0.0
    %868 = vmatpush1.msra.mxu0 0.0
    %869 = vmatprep.subr.mxu0 0.0
    %870 = vmatpush1.msra.mxu0 0.0
    %871 = vmatprep.subr.mxu0 0.0
    %872 = vmatpush1.msra.mxu0 0.0
    %873 = vmatprep.subr.mxu0 0.0
    %874 = vmatpush1.msra.mxu0 0.0
    %875 = vmatprep.subr.mxu0 0.0
    %876 = vmatpush1.msra.mxu0 0.0
    %877 = vmatprep.subr.mxu0 0.0
    %878 = vmatpush1.msra.mxu0 0.0
    %879 = vmatprep.mubr.f32.mxu0 0.0
    %880 = vmatmul.mubr.f32.gmra.mrb[0].mxu0 %v791
    %v881 = vpop.f32.mrb[0].mxu0
    %v882 = vadd.f32 %v813, %v881
    %v883 = vpop.f32.mrb[0].mxu0
    %884 = vdwg.mxu0
    %885 = vst.msk [vmem:[#allocation7] sm:$0xff] %vm77, %v882
    // Predicated region
    $region54: #{tpu_custom_call.1} parent=1 // pred_check
      _
    $region55: #{tpu_custom_call.1} parent=1 // pred_check_branch
      %887 = sbr.rel (0) target = $region57
    $region56: #{tpu_custom_call.1} parent=1 // pred_region
      %s889 = ssub.s32 128, 64
      %890 = vsyncadd [#allocation4], %s889
      %s891 = sshll.u32 [#allocation7], 4
      %s892 = int_to_ptr.vmem [resolvable:$true] %s891
      %897 = dma.vmem_to_hbm [thread:$0]  %s892, 64, %s11, [#allocation4], 64, 64, 4
    $region57: #{tpu_custom_call.1} parent=1 // pred_fallthru
      _
    // Predicated region
    $region58: #{tpu_custom_call.1} parent=1 // pred_check
      _
    $region59: #{tpu_custom_call.1} parent=1 // pred_check_branch
      %899 = sbr.rel (0) target = $region61
    $region60: #{tpu_custom_call.1} parent=1 // pred_region
      %900 = dma.done [#allocation4], 128
    $region61: #{tpu_custom_call.1} parent=1 // pred_fallthru
      _
    %901 = vsyncpa [#allocation3], 1
    %902 = vsyncpa [#allocation6], 1
    %903 = vsyncpa [#allocation4], 1

</llo_original>
